<compile_context>
chip_gen: v7x
topology: tpu7x:2x2x1
jax: 0.10.0
libtpu: 0.0.40
codegen_flags: <defaults>
</compile_context>

<pallas_src>
import functools
import math

import jax
import jax.numpy as jnp
from jax import lax
from jax.experimental import pallas as pl
from jax.experimental.pallas import tpu as pltpu


def _round_up(x, m):
    return ((x + m - 1) // m) * m


def _gelu_exact(x):
    # nn.GELU() default is the exact erf-based GELU.
    return 0.5 * x * (1.0 + lax.erf(x * (1.0 / math.sqrt(2.0))))


def _gelu_tanh(x):
    # tanh-approximate GELU: transcendental lands in the EUP slot (co-issued),
    # VALU work per element drops ~2-3x. Numerics differ from exact erf GELU.
    c = math.sqrt(2.0 / math.pi)
    return 0.5 * x * (1.0 + jnp.tanh(c * (x + 0.044715 * x * x * x)))


def mlp_kernel(xT_ref, w0_ref, b0_ref, wh_ref, bh_ref, wl_ref, bl_ref, o_ref,
               *, num_hidden_layers, hidden_size, init_size,
               lane_chunk, num_chunks, use_approx_gelu):
    # xT_ref: (init_size, TB)   batch on the lane axis
    # w0_ref: (H, init_size), b0_ref: (H, 1)
    # wh_ref: (L*H, H) slab, bh_ref: (L*H, 1) slab
    # wl_ref: (H, 1), bl_ref: (1, 1)
    # o_ref : (1, TB)   lane-dense output tile
    gelu = _gelu_tanh if use_approx_gelu else _gelu_exact

    w0 = w0_ref[...]                               # (H, init_size)
    b0 = b0_ref[...]                               # (H, 1)
    wl = wl_ref[...]                               # (H, 1)
    bl = bl_ref[...]                               # (1, 1)

    # Process the lane tile in static sub-chunks so the live activation stays
    # within the vreg file even when TB > 1024 (chunk outer, layer loop inner).
    for c in range(num_chunks):
        start = c * lane_chunk                     # static Python int
        x = xT_ref[:, pl.ds(start, lane_chunk)]    # (init_size, chunk)

        # Input layer: K=init_size (=2) -> VPU FMAs in outer-product form.
        h = b0
        for j in range(init_size):
            h = h + w0[:, j:j + 1] * x[j:j + 1, :]  # (H,1)*(1,chunk) -> (H,chunk)
        h = gelu(h)

        # Hidden layers: (H,H) @ (H,chunk) on the MXU, f32 accumulation.
        for i in range(num_hidden_layers):
            w = wh_ref[pl.ds(i * hidden_size, hidden_size), :]   # (H, H)
            b = bh_ref[pl.ds(i * hidden_size, hidden_size), :]   # (H, 1)
            h = gelu(jnp.dot(w, h, preferred_element_type=jnp.float32) + b)

        # Output layer: N=1 -> elementwise mul + sublane reduce (XLU), not MXU.
        y = jnp.sum(wl * h, axis=0, keepdims=True) + bl           # (1, chunk)

        # Final tanh squashed to [0, 1]; lane-dense store.
        o_ref[:, pl.ds(start, lane_chunk)] = (jnp.tanh(y) + 1.0) * 0.5


def simple_forward(x, params, *, tb=1024, use_approx_gelu=False):
    """x: (B, init_size) f32 -> (B, 1) f32."""
    w0, b0, wh, bh, wl, bl = params
    num_hidden_layers, hidden_size = wh.shape[0], wh.shape[1]
    init_size = w0.shape[1]
    B = x.shape[0]

    # ---- Tile-size selection ------------------------------------------------
    b_lanes = _round_up(B, 128)                  # minimal lane-padded batch
    tb = max(128, min(_round_up(tb, 128), b_lanes))
    n_steps = (b_lanes + tb - 1) // tb
    # Keep >= 2 grid steps when the batch allows (megacore / v7x 2 TCs); also
    # re-balances the tile to minimize tail padding.
    if n_steps == 1 and b_lanes >= 1024:
        n_steps = 2
    tb = _round_up((b_lanes + n_steps - 1) // n_steps, 128)
    B_pad = n_steps * tb

    # Inner chunking keeps the live (H, chunk) activation <= ~32 vregs.
    lane_chunk = tb
    if tb > 1024:
        for c in (1024, 512, 256, 128):
            if tb % c == 0:
                lane_chunk = c
                break
    num_chunks = tb // lane_chunk

    # ---- Data prep ----------------------------------------------------------
    # Transpose so batch lives on the lane (last) axis; zero-pad the tail.
    xT = jnp.pad(x, ((0, B_pad - B), (0, 0))).T                  # (init, B_pad)
    # Flatten hidden weights/biases into contiguous slabs (one-shot DMA).
    wh_flat = wh.reshape(num_hidden_layers * hidden_size, hidden_size)
    bh_flat = bh.reshape(num_hidden_layers * hidden_size, 1)

    grid = (B_pad // tb,)
    out = pl.pallas_call(
        functools.partial(
            mlp_kernel,
            num_hidden_layers=num_hidden_layers,
            hidden_size=hidden_size,
            init_size=init_size,
            lane_chunk=lane_chunk,
            num_chunks=num_chunks,
            use_approx_gelu=use_approx_gelu,
        ),
        out_shape=jax.ShapeDtypeStruct((1, B_pad), jnp.float32),
        grid_spec=pltpu.PrefetchScalarGridSpec(
            num_scalar_prefetch=0,
            grid=grid,
            in_specs=[
                # x tile streams along the batch grid axis.
                pl.BlockSpec((init_size, tb), lambda i: (0, i)),
                # Weights/biases: constant index_map -> DMA'd once, VMEM-resident.
                pl.BlockSpec((hidden_size, init_size), lambda i: (0, 0)),
                pl.BlockSpec((hidden_size, 1), lambda i: (0, 0)),
                pl.BlockSpec((num_hidden_layers * hidden_size, hidden_size),
                             lambda i: (0, 0)),
                pl.BlockSpec((num_hidden_layers * hidden_size, 1),
                             lambda i: (0, 0)),
                pl.BlockSpec((hidden_size, 1), lambda i: (0, 0)),
                pl.BlockSpec((1, 1), lambda i: (0, 0)),
            ],
            out_specs=pl.BlockSpec((1, tb), lambda i: (0, i)),
        ),
        compiler_params=pltpu.CompilerParams(
            dimension_semantics=("parallel",),
        ),
    )(xT, w0, b0, wh_flat, bh_flat, wl, bl)

    return out[0, :B][:, None]  # (B, 1)


def init_params(key, init_size, hidden_size, num_hidden_layers):
    """Deterministic init mimicking nn.Linear's U(-1/sqrt(fan_in), 1/sqrt(fan_in)).

    Weights are stored in PyTorch (out, in) layout; biases as column vectors.
    """
    ks = jax.random.split(key, 2 * (num_hidden_layers + 2))

    def uniform(k, shape, fan_in):
        bound = 1.0 / math.sqrt(fan_in)
        return jax.random.uniform(k, shape, jnp.float32, -bound, bound)

    w0 = uniform(ks[0], (hidden_size, init_size), init_size)            # (H, 2)
    b0 = uniform(ks[1], (hidden_size, 1), init_size)                    # (H, 1)
    wh = jnp.stack([uniform(ks[2 + 2 * i], (hidden_size, hidden_size), hidden_size)
                    for i in range(num_hidden_layers)])                 # (L, H, H)
    bh = jnp.stack([uniform(ks[3 + 2 * i], (hidden_size, 1), hidden_size)
                    for i in range(num_hidden_layers)])                 # (L, H, 1)
    wl = uniform(ks[-2], (hidden_size, 1), hidden_size)                 # (H, 1)
    bl = uniform(ks[-1], (1, 1), hidden_size)                           # (1, 1)
    return w0, b0, wh, bh, wl, bl


def reference_forward(x, params):
    w0, b0, wh, bh, wl, bl = params
    h = _gelu_exact(x @ w0.T + b0[:, 0])
    for i in range(wh.shape[0]):
        h = _gelu_exact(h @ wh[i].T + bh[i][:, 0])
    y = h @ wl + bl[0]
    return (jnp.tanh(y) + 1.0) / 2.0


if __name__ == "__main__":
    key = jax.random.PRNGKey(0)
    k_param, k_x1, k_x2, k_x3 = jax.random.split(key, 4)

    # Shapes consistent with the module: init_size=2, hidden=32, 7 hidden layers.
    init_size, hidden_size, num_hidden_layers = 2, 32, 7
    params = init_params(k_param, init_size, hidden_size, num_hidden_layers)

    # Case 1: tiny batch (single grid step, padded to one lane-width tile).
    x1 = jax.random.normal(k_x1, (8, init_size), jnp.float32)
    out1 = jax.block_until_ready(simple_forward(x1, params))
    ref1 = reference_forward(x1, params)
    assert out1.shape == (8, 1)
    assert jnp.allclose(out1, ref1, atol=1e-5, rtol=1e-5)

    # Case 2: batch not a multiple of the tile -> multi-step grid + tail padding.
    x2 = jax.random.normal(k_x2, (300, init_size), jnp.float32)
    out2 = jax.block_until_ready(simple_forward(x2, params, tb=128))
    ref2 = reference_forward(x2, params)
    assert out2.shape == (300, 1)
    assert jnp.allclose(out2, ref2, atol=1e-5, rtol=1e-5)

    # Case 3: larger batch, default tile (1024 lanes, >= 2 grid steps for megacore).
    x3 = jax.random.normal(k_x3, (2048, init_size), jnp.float32)
    out3 = jax.block_until_ready(simple_forward(x3, params))
    ref3 = reference_forward(x3, params)
    assert out3.shape == (2048, 1)
    assert jnp.allclose(out3, ref3, atol=1e-5, rtol=1e-5)

    print("KERNEL_OK")
</pallas_src>

<mosaic_0001>
module attributes {stable_mosaic.version = 11 : i64} {
  func.func @mlp_kernel(%arg0: i32, %arg1: memref<2x128xf32, #tpu.memory_space<vmem>>, %arg2: memref<32x2xf32, #tpu.memory_space<vmem>>, %arg3: memref<32x1xf32, #tpu.memory_space<vmem>>, %arg4: memref<224x32xf32, #tpu.memory_space<vmem>>, %arg5: memref<224x1xf32, #tpu.memory_space<vmem>>, %arg6: memref<32x1xf32, #tpu.memory_space<vmem>>, %arg7: memref<1x1xf32, #tpu.memory_space<vmem>>, %arg8: memref<1x128xf32, #tpu.memory_space<vmem>>) attributes {dimension_semantics = [#tpu.dimension_semantics<parallel>], iteration_bounds = array<i64: 1>, scalar_prefetch = 0 : i64, scratch_operands = 0 : i64, tpu.core_type = #tpu.core_type<tc>, window_params = [{transform_indices = @transform_0, window_bounds = array<i64: 2, 128>}, {pipeline_mode = #tpu.pipeline_mode<synchronous>, transform_indices = @transform_1, window_bounds = array<i64: 32, 2>}, {pipeline_mode = #tpu.pipeline_mode<synchronous>, transform_indices = @transform_2, window_bounds = array<i64: 32, 1>}, {pipeline_mode = #tpu.pipeline_mode<synchronous>, transform_indices = @transform_3, window_bounds = array<i64: 224, 32>}, {pipeline_mode = #tpu.pipeline_mode<synchronous>, transform_indices = @transform_4, window_bounds = array<i64: 224, 1>}, {pipeline_mode = #tpu.pipeline_mode<synchronous>, transform_indices = @transform_5, window_bounds = array<i64: 32, 1>}, {pipeline_mode = #tpu.pipeline_mode<synchronous>, transform_indices = @transform_6, window_bounds = array<i64: 1, 1>}, {transform_indices = @transform_7, window_bounds = array<i64: 1, 128>}]} {
    %c0 = arith.constant 0 : index
    %c0_0 = arith.constant 0 : index
    %0 = vector.load %arg2[%c0, %c0_0] : memref<32x2xf32, #tpu.memory_space<vmem>>, vector<32x2xf32>
    %c0_1 = arith.constant 0 : index
    %c0_2 = arith.constant 0 : index
    %1 = vector.load %arg3[%c0_1, %c0_2] : memref<32x1xf32, #tpu.memory_space<vmem>>, vector<32x1xf32>
    %c0_3 = arith.constant 0 : index
    %c0_4 = arith.constant 0 : index
    %2 = vector.load %arg6[%c0_3, %c0_4] : memref<32x1xf32, #tpu.memory_space<vmem>>, vector<32x1xf32>
    %c0_5 = arith.constant 0 : index
    %c0_6 = arith.constant 0 : index
    %3 = vector.load %arg7[%c0_5, %c0_6] : memref<1x1xf32, #tpu.memory_space<vmem>>, vector<1x1xf32>
    %c0_7 = arith.constant 0 : index
    %c0_8 = arith.constant 0 : index
    %4 = vector.load %arg1[%c0_7, %c0_8] : memref<2x128xf32, #tpu.memory_space<vmem>>, vector<2x128xf32>
    %5 = vector.extract_strided_slice %0 {offsets = [0, 0], sizes = [32, 1], strides = [1, 1]} : vector<32x2xf32> to vector<32x1xf32>
    %6 = vector.extract_strided_slice %4 {offsets = [0, 0], sizes = [1, 128], strides = [1, 1]} : vector<2x128xf32> to vector<1x128xf32>
    %7 = vector.broadcast %5 : vector<32x1xf32> to vector<32x128xf32>
    %8 = vector.broadcast %6 : vector<1x128xf32> to vector<32x128xf32>
    %9 = arith.mulf %7, %8 : vector<32x128xf32>
    %10 = vector.broadcast %1 : vector<32x1xf32> to vector<32x128xf32>
    %11 = arith.addf %10, %9 : vector<32x128xf32>
    %12 = vector.extract_strided_slice %0 {offsets = [0, 1], sizes = [32, 1], strides = [1, 1]} : vector<32x2xf32> to vector<32x1xf32>
    %13 = vector.extract_strided_slice %4 {offsets = [1, 0], sizes = [1, 128], strides = [1, 1]} : vector<2x128xf32> to vector<1x128xf32>
    %14 = vector.broadcast %12 : vector<32x1xf32> to vector<32x128xf32>
    %15 = vector.broadcast %13 : vector<1x128xf32> to vector<32x128xf32>
    %16 = arith.mulf %14, %15 : vector<32x128xf32>
    %17 = arith.addf %11, %16 : vector<32x128xf32>
    %cst = arith.constant 5.000000e-01 : f32
    %18 = vector.broadcast %cst : f32 to vector<32x128xf32>
    %19 = arith.mulf %18, %17 : vector<32x128xf32>
    %cst_9 = arith.constant 0.707106769 : f32
    %20 = vector.broadcast %cst_9 : f32 to vector<32x128xf32>
    %21 = arith.mulf %17, %20 : vector<32x128xf32>
    %22 = math.erf %21 : vector<32x128xf32>
    %cst_10 = arith.constant 1.000000e+00 : f32
    %23 = vector.broadcast %cst_10 : f32 to vector<32x128xf32>
    %24 = arith.addf %23, %22 : vector<32x128xf32>
    %25 = arith.mulf %19, %24 : vector<32x128xf32>
    %c0_11 = arith.constant 0 : index
    %c0_12 = arith.constant 0 : index
    %26 = vector.load %arg4[%c0_11, %c0_12] : memref<224x32xf32, #tpu.memory_space<vmem>>, vector<32x32xf32>
    %c0_13 = arith.constant 0 : index
    %c0_14 = arith.constant 0 : index
    %27 = vector.load %arg5[%c0_13, %c0_14] : memref<224x1xf32, #tpu.memory_space<vmem>>, vector<32x1xf32>
    %cst_15 = arith.constant dense<0.000000e+00> : vector<32x128xf32>
    %28 = tpu.matmul %26, %25, %cst_15 {dimension_numbers = #tpu.dot_dimension_numbers<[1], [0], [0], [1], [0, 0, 1, 1], [], []>} : vector<32x32xf32>, vector<32x128xf32>, vector<32x128xf32> -> vector<32x128xf32>
    %29 = vector.broadcast %27 : vector<32x1xf32> to vector<32x128xf32>
    %30 = arith.addf %28, %29 : vector<32x128xf32>
    %cst_16 = arith.constant 5.000000e-01 : f32
    %31 = vector.broadcast %cst_16 : f32 to vector<32x128xf32>
    %32 = arith.mulf %31, %30 : vector<32x128xf32>
    %cst_17 = arith.constant 0.707106769 : f32
    %33 = vector.broadcast %cst_17 : f32 to vector<32x128xf32>
    %34 = arith.mulf %30, %33 : vector<32x128xf32>
    %35 = math.erf %34 : vector<32x128xf32>
    %cst_18 = arith.constant 1.000000e+00 : f32
    %36 = vector.broadcast %cst_18 : f32 to vector<32x128xf32>
    %37 = arith.addf %36, %35 : vector<32x128xf32>
    %38 = arith.mulf %32, %37 : vector<32x128xf32>
    %c32 = arith.constant 32 : index
    %c0_19 = arith.constant 0 : index
    %39 = vector.load %arg4[%c32, %c0_19] : memref<224x32xf32, #tpu.memory_space<vmem>>, vector<32x32xf32>
    %c32_20 = arith.constant 32 : index
    %c0_21 = arith.constant 0 : index
    %40 = vector.load %arg5[%c32_20, %c0_21] : memref<224x1xf32, #tpu.memory_space<vmem>>, vector<32x1xf32>
    %cst_22 = arith.constant dense<0.000000e+00> : vector<32x128xf32>
    %41 = tpu.matmul %39, %38, %cst_22 {dimension_numbers = #tpu.dot_dimension_numbers<[1], [0], [0], [1], [0, 0, 1, 1], [], []>} : vector<32x32xf32>, vector<32x128xf32>, vector<32x128xf32> -> vector<32x128xf32>
    %42 = vector.broadcast %40 : vector<32x1xf32> to vector<32x128xf32>
    %43 = arith.addf %41, %42 : vector<32x128xf32>
    %cst_23 = arith.constant 5.000000e-01 : f32
    %44 = vector.broadcast %cst_23 : f32 to vector<32x128xf32>
    %45 = arith.mulf %44, %43 : vector<32x128xf32>
    %cst_24 = arith.constant 0.707106769 : f32
    %46 = vector.broadcast %cst_24 : f32 to vector<32x128xf32>
    %47 = arith.mulf %43, %46 : vector<32x128xf32>
    %48 = math.erf %47 : vector<32x128xf32>
    %cst_25 = arith.constant 1.000000e+00 : f32
    %49 = vector.broadcast %cst_25 : f32 to vector<32x128xf32>
    %50 = arith.addf %49, %48 : vector<32x128xf32>
    %51 = arith.mulf %45, %50 : vector<32x128xf32>
    %c64 = arith.constant 64 : index
    %c0_26 = arith.constant 0 : index
    %52 = vector.load %arg4[%c64, %c0_26] : memref<224x32xf32, #tpu.memory_space<vmem>>, vector<32x32xf32>
    %c64_27 = arith.constant 64 : index
    %c0_28 = arith.constant 0 : index
    %53 = vector.load %arg5[%c64_27, %c0_28] : memref<224x1xf32, #tpu.memory_space<vmem>>, vector<32x1xf32>
    %cst_29 = arith.constant dense<0.000000e+00> : vector<32x128xf32>
    %54 = tpu.matmul %52, %51, %cst_29 {dimension_numbers = #tpu.dot_dimension_numbers<[1], [0], [0], [1], [0, 0, 1, 1], [], []>} : vector<32x32xf32>, vector<32x128xf32>, vector<32x128xf32> -> vector<32x128xf32>
    %55 = vector.broadcast %53 : vector<32x1xf32> to vector<32x128xf32>
    %56 = arith.addf %54, %55 : vector<32x128xf32>
    %cst_30 = arith.constant 5.000000e-01 : f32
    %57 = vector.broadcast %cst_30 : f32 to vector<32x128xf32>
    %58 = arith.mulf %57, %56 : vector<32x128xf32>
    %cst_31 = arith.constant 0.707106769 : f32
    %59 = vector.broadcast %cst_31 : f32 to vector<32x128xf32>
    %60 = arith.mulf %56, %59 : vector<32x128xf32>
    %61 = math.erf %60 : vector<32x128xf32>
    %cst_32 = arith.constant 1.000000e+00 : f32
    %62 = vector.broadcast %cst_32 : f32 to vector<32x128xf32>
    %63 = arith.addf %62, %61 : vector<32x128xf32>
    %64 = arith.mulf %58, %63 : vector<32x128xf32>
    %c96 = arith.constant 96 : index
    %c0_33 = arith.constant 0 : index
    %65 = vector.load %arg4[%c96, %c0_33] : memref<224x32xf32, #tpu.memory_space<vmem>>, vector<32x32xf32>
    %c96_34 = arith.constant 96 : index
    %c0_35 = arith.constant 0 : index
    %66 = vector.load %arg5[%c96_34, %c0_35] : memref<224x1xf32, #tpu.memory_space<vmem>>, vector<32x1xf32>
    %cst_36 = arith.constant dense<0.000000e+00> : vector<32x128xf32>
    %67 = tpu.matmul %65, %64, %cst_36 {dimension_numbers = #tpu.dot_dimension_numbers<[1], [0], [0], [1], [0, 0, 1, 1], [], []>} : vector<32x32xf32>, vector<32x128xf32>, vector<32x128xf32> -> vector<32x128xf32>
    %68 = vector.broadcast %66 : vector<32x1xf32> to vector<32x128xf32>
    %69 = arith.addf %67, %68 : vector<32x128xf32>
    %cst_37 = arith.constant 5.000000e-01 : f32
    %70 = vector.broadcast %cst_37 : f32 to vector<32x128xf32>
    %71 = arith.mulf %70, %69 : vector<32x128xf32>
    %cst_38 = arith.constant 0.707106769 : f32
    %72 = vector.broadcast %cst_38 : f32 to vector<32x128xf32>
    %73 = arith.mulf %69, %72 : vector<32x128xf32>
    %74 = math.erf %73 : vector<32x128xf32>
    %cst_39 = arith.constant 1.000000e+00 : f32
    %75 = vector.broadcast %cst_39 : f32 to vector<32x128xf32>
    %76 = arith.addf %75, %74 : vector<32x128xf32>
    %77 = arith.mulf %71, %76 : vector<32x128xf32>
    %c128 = arith.constant 128 : index
    %c0_40 = arith.constant 0 : index
    %78 = vector.load %arg4[%c128, %c0_40] : memref<224x32xf32, #tpu.memory_space<vmem>>, vector<32x32xf32>
    %c128_41 = arith.constant 128 : index
    %c0_42 = arith.constant 0 : index
    %79 = vector.load %arg5[%c128_41, %c0_42] : memref<224x1xf32, #tpu.memory_space<vmem>>, vector<32x1xf32>
    %cst_43 = arith.constant dense<0.000000e+00> : vector<32x128xf32>
    %80 = tpu.matmul %78, %77, %cst_43 {dimension_numbers = #tpu.dot_dimension_numbers<[1], [0], [0], [1], [0, 0, 1, 1], [], []>} : vector<32x32xf32>, vector<32x128xf32>, vector<32x128xf32> -> vector<32x128xf32>
    %81 = vector.broadcast %79 : vector<32x1xf32> to vector<32x128xf32>
    %82 = arith.addf %80, %81 : vector<32x128xf32>
    %cst_44 = arith.constant 5.000000e-01 : f32
    %83 = vector.broadcast %cst_44 : f32 to vector<32x128xf32>
    %84 = arith.mulf %83, %82 : vector<32x128xf32>
    %cst_45 = arith.constant 0.707106769 : f32
    %85 = vector.broadcast %cst_45 : f32 to vector<32x128xf32>
    %86 = arith.mulf %82, %85 : vector<32x128xf32>
    %87 = math.erf %86 : vector<32x128xf32>
    %cst_46 = arith.constant 1.000000e+00 : f32
    %88 = vector.broadcast %cst_46 : f32 to vector<32x128xf32>
    %89 = arith.addf %88, %87 : vector<32x128xf32>
    %90 = arith.mulf %84, %89 : vector<32x128xf32>
    %c160 = arith.constant 160 : index
    %c0_47 = arith.constant 0 : index
    %91 = vector.load %arg4[%c160, %c0_47] : memref<224x32xf32, #tpu.memory_space<vmem>>, vector<32x32xf32>
    %c160_48 = arith.constant 160 : index
    %c0_49 = arith.constant 0 : index
    %92 = vector.load %arg5[%c160_48, %c0_49] : memref<224x1xf32, #tpu.memory_space<vmem>>, vector<32x1xf32>
    %cst_50 = arith.constant dense<0.000000e+00> : vector<32x128xf32>
    %93 = tpu.matmul %91, %90, %cst_50 {dimension_numbers = #tpu.dot_dimension_numbers<[1], [0], [0], [1], [0, 0, 1, 1], [], []>} : vector<32x32xf32>, vector<32x128xf32>, vector<32x128xf32> -> vector<32x128xf32>
    %94 = vector.broadcast %92 : vector<32x1xf32> to vector<32x128xf32>
    %95 = arith.addf %93, %94 : vector<32x128xf32>
    %cst_51 = arith.constant 5.000000e-01 : f32
    %96 = vector.broadcast %cst_51 : f32 to vector<32x128xf32>
    %97 = arith.mulf %96, %95 : vector<32x128xf32>
    %cst_52 = arith.constant 0.707106769 : f32
    %98 = vector.broadcast %cst_52 : f32 to vector<32x128xf32>
    %99 = arith.mulf %95, %98 : vector<32x128xf32>
    %100 = math.erf %99 : vector<32x128xf32>
    %cst_53 = arith.constant 1.000000e+00 : f32
    %101 = vector.broadcast %cst_53 : f32 to vector<32x128xf32>
    %102 = arith.addf %101, %100 : vector<32x128xf32>
    %103 = arith.mulf %97, %102 : vector<32x128xf32>
    %c192 = arith.constant 192 : index
    %c0_54 = arith.constant 0 : index
    %104 = vector.load %arg4[%c192, %c0_54] : memref<224x32xf32, #tpu.memory_space<vmem>>, vector<32x32xf32>
    %c192_55 = arith.constant 192 : index
    %c0_56 = arith.constant 0 : index
    %105 = vector.load %arg5[%c192_55, %c0_56] : memref<224x1xf32, #tpu.memory_space<vmem>>, vector<32x1xf32>
    %cst_57 = arith.constant dense<0.000000e+00> : vector<32x128xf32>
    %106 = tpu.matmul %104, %103, %cst_57 {dimension_numbers = #tpu.dot_dimension_numbers<[1], [0], [0], [1], [0, 0, 1, 1], [], []>} : vector<32x32xf32>, vector<32x128xf32>, vector<32x128xf32> -> vector<32x128xf32>
    %107 = vector.broadcast %105 : vector<32x1xf32> to vector<32x128xf32>
    %108 = arith.addf %106, %107 : vector<32x128xf32>
    %cst_58 = arith.constant 5.000000e-01 : f32
    %109 = vector.broadcast %cst_58 : f32 to vector<32x128xf32>
    %110 = arith.mulf %109, %108 : vector<32x128xf32>
    %cst_59 = arith.constant 0.707106769 : f32
    %111 = vector.broadcast %cst_59 : f32 to vector<32x128xf32>
    %112 = arith.mulf %108, %111 : vector<32x128xf32>
    %113 = math.erf %112 : vector<32x128xf32>
    %cst_60 = arith.constant 1.000000e+00 : f32
    %114 = vector.broadcast %cst_60 : f32 to vector<32x128xf32>
    %115 = arith.addf %114, %113 : vector<32x128xf32>
    %116 = arith.mulf %110, %115 : vector<32x128xf32>
    %117 = vector.broadcast %2 : vector<32x1xf32> to vector<32x128xf32>
    %118 = arith.mulf %117, %116 : vector<32x128xf32>
    %cst_61 = arith.constant dense<0.000000e+00> : vector<128xf32>
    %119 = vector.multi_reduction <add>, %118, %cst_61 [0] : vector<32x128xf32> to vector<128xf32>
    %120 = vector.shape_cast %119 : vector<128xf32> to vector<1x128xf32>
    %121 = vector.broadcast %3 : vector<1x1xf32> to vector<1x128xf32>
    %122 = arith.addf %120, %121 : vector<1x128xf32>
    %123 = math.tanh %122 : vector<1x128xf32>
    %cst_62 = arith.constant 1.000000e+00 : f32
    %124 = vector.broadcast %cst_62 : f32 to vector<1x128xf32>
    %125 = arith.addf %123, %124 : vector<1x128xf32>
    %cst_63 = arith.constant 5.000000e-01 : f32
    %126 = vector.broadcast %cst_63 : f32 to vector<1x128xf32>
    %127 = arith.mulf %125, %126 : vector<1x128xf32>
    %c0_64 = arith.constant 0 : index
    %c0_65 = arith.constant 0 : index
    %128 = vector.load %arg8[%c0_64, %c0_65] : memref<1x128xf32, #tpu.memory_space<vmem>>, vector<1x128xf32>
    tpu.vector_store %arg8[%c0_64, %c0_65], %127 {strides = array<i32>} : memref<1x128xf32, #tpu.memory_space<vmem>>, vector<1x128xf32>,
    return
  }
  func.func @transform_0(%arg0: i32) -> (i32, i32) {
    %c0_i32 = arith.constant 0 : i32
    %c0_i32_0 = arith.constant 0 : i32
    return %c0_i32, %arg0 : i32, i32
  }
  func.func @transform_1(%arg0: i32) -> (i32, i32) {
    %c0_i32 = arith.constant 0 : i32
    %c0_i32_0 = arith.constant 0 : i32
    %c0_i32_1 = arith.constant 0 : i32
    return %c0_i32, %c0_i32_0 : i32, i32
  }
  func.func @transform_2(%arg0: i32) -> (i32, i32) {
    %c0_i32 = arith.constant 0 : i32
    %c0_i32_0 = arith.constant 0 : i32
    %c0_i32_1 = arith.constant 0 : i32
    return %c0_i32, %c0_i32_0 : i32, i32
  }
  func.func @transform_3(%arg0: i32) -> (i32, i32) {
    %c0_i32 = arith.constant 0 : i32
    %c0_i32_0 = arith.constant 0 : i32
    %c0_i32_1 = arith.constant 0 : i32
    return %c0_i32, %c0_i32_0 : i32, i32
  }
  func.func @transform_4(%arg0: i32) -> (i32, i32) {
    %c0_i32 = arith.constant 0 : i32
    %c0_i32_0 = arith.constant 0 : i32
    %c0_i32_1 = arith.constant 0 : i32
    return %c0_i32, %c0_i32_0 : i32, i32
  }
  func.func @transform_5(%arg0: i32) -> (i32, i32) {
    %c0_i32 = arith.constant 0 : i32
    %c0_i32_0 = arith.constant 0 : i32
    %c0_i32_1 = arith.constant 0 : i32
    return %c0_i32, %c0_i32_0 : i32, i32
  }
  func.func @transform_6(%arg0: i32) -> (i32, i32) {
    %c0_i32 = arith.constant 0 : i32
    %c0_i32_0 = arith.constant 0 : i32
    %c0_i32_1 = arith.constant 0 : i32
    return %c0_i32, %c0_i32_0 : i32, i32
  }
  func.func @transform_7(%arg0: i32) -> (i32, i32) {
    %c0_i32 = arith.constant 0 : i32
    %c0_i32_0 = arith.constant 0 : i32
    return %c0_i32, %arg0 : i32, i32
  }
}

</mosaic_0001>

<llo_original>
// kernel: tpu_custom_call.1
$region0: #{tpu_custom_call.1}
  #allocation0 [shape = 'u32[]', space=smem, size = 0x4, offset = 0x4, fixed_abs, tag = 'smem constant byte address 0x4 - core index']
  #allocation1 [shape = 'u32[144,128]{1,0:T(1,128)}', space=vmem, size = 0x12000, scoped, tag = 'internal scratch']
  #allocation2 [shape = 'f32[1,1]{1,0:T(1,128)S(1)}', space=vmem, size = 0x200, scoped, tag = 'scoped memory for tpu_custom_call.1']
  %s0 = inlined_call_operand.vmem [shape: f32[2,128], index: 0, kind: input, shape index: {}]
  %s1 = inlined_call_operand.vmem [shape: f32[32,2], index: 1, kind: input, shape index: {}]
  %s2 = inlined_call_operand.vmem [shape: f32[32,1], index: 2, kind: input, shape index: {}]
  %s3 = inlined_call_operand.vmem [shape: f32[224,32], index: 3, kind: input, shape index: {}]
  %s4 = inlined_call_operand.vmem [shape: f32[224,1], index: 4, kind: input, shape index: {}]
  %s5 = inlined_call_operand.vmem [shape: f32[32,1], index: 5, kind: input, shape index: {}]
  %s6 = inlined_call_operand.<no memory space> [shape: f32[1,1], index: 6, kind: input, shape index: {}]
  %s7 = inlined_call_operand.hbm [shape: f32[1,128], index: 7, kind: output, shape index: {}]
  %s8 = sld [smem:[#allocation0]]
  $region38: #{tpu_custom_call.1} parent=0
    _
  %s10 = ssub.s32 1, %s8
  %s11 = scalar_select 0, %s10, %s8
  %v12 = vstv %s6
  %13 = vst [vmem:[#allocation2] sm:$0x1] %v12
  $region1: #{tpu_custom_call.1} parent=0
    #allocation3 [shape = 'u8[512]{0}', space=vmem, size = 0x400, scoped, tag = 'output window, operand 0, single buffered']
    #allocation4 [shape = 's32[1]{0}', space=sflag, size = 0x4, scoped, tag = 'scoped memory for tpu_custom_call.1']
    %14 = vsyncpa [#allocation4], 0
    // Predicated region
    $region2: #{tpu_custom_call.1} parent=1 // pred_check
      _
    $region3: #{tpu_custom_call.1} parent=1 // pred_check_branch
      %16 = sbr.rel (0) target = $region5
    $region4: #{tpu_custom_call.1} parent=1 // pred_region
      _
    $region5: #{tpu_custom_call.1} parent=1 // pred_fallthru
      _
    // Predicated region
    $region6: #{tpu_custom_call.1} parent=1 // pred_check
      _
    $region7: #{tpu_custom_call.1} parent=1 // pred_check_branch
      %18 = sbr.rel (0) target = $region9
    $region8: #{tpu_custom_call.1} parent=1 // pred_region
      _
    $region9: #{tpu_custom_call.1} parent=1 // pred_fallthru
      _
    // Predicated region
    $region10: #{tpu_custom_call.1} parent=1 // pred_check
      _
    $region11: #{tpu_custom_call.1} parent=1 // pred_check_branch
      %20 = sbr.rel (0) target = $region13
    $region12: #{tpu_custom_call.1} parent=1 // pred_region
      _
    $region13: #{tpu_custom_call.1} parent=1 // pred_fallthru
      _
    // Predicated region
    $region14: #{tpu_custom_call.1} parent=1 // pred_check
      _
    $region15: #{tpu_custom_call.1} parent=1 // pred_check_branch
      %22 = sbr.rel (0) target = $region17
    $region16: #{tpu_custom_call.1} parent=1 // pred_region
      _
    $region17: #{tpu_custom_call.1} parent=1 // pred_fallthru
      _
    // Predicated region
    $region18: #{tpu_custom_call.1} parent=1 // pred_check
      _
    $region19: #{tpu_custom_call.1} parent=1 // pred_check_branch
      %24 = sbr.rel (0) target = $region21
    $region20: #{tpu_custom_call.1} parent=1 // pred_region
      _
    $region21: #{tpu_custom_call.1} parent=1 // pred_fallthru
      _
    // Predicated region
    $region22: #{tpu_custom_call.1} parent=1 // pred_check
      _
    $region23: #{tpu_custom_call.1} parent=1 // pred_check_branch
      %26 = sbr.rel (0) target = $region25
    $region24: #{tpu_custom_call.1} parent=1 // pred_region
      _
    $region25: #{tpu_custom_call.1} parent=1 // pred_fallthru
      _
    // Predicated region
    $region26: #{tpu_custom_call.1} parent=1 // pred_check
      _
    $region27: #{tpu_custom_call.1} parent=1 // pred_check_branch
      %28 = sbr.rel (0) target = $region29
    $region28: #{tpu_custom_call.1} parent=1 // pred_region
      _
    $region29: #{tpu_custom_call.1} parent=1 // pred_fallthru
      _
    %v29 = vld [vmem:[%s1] sm:$0xff]
    %v30 = vld [vmem:[%s1 + $0x8] sm:$0xff]
    %v31 = vld [vmem:[%s1 + $0x10] sm:$0xff]
    %v32 = vld [vmem:[%s1 + $0x18] sm:$0xff]
    %v33 = vld [vmem:[%s2] sm:$0xff]
    %v34 = vld [vmem:[%s2 + $0x8] sm:$0xff]
    %v35 = vld [vmem:[%s2 + $0x10] sm:$0xff]
    %v36 = vld [vmem:[%s2 + $0x18] sm:$0xff]
    %v37 = vld [vmem:[%s5] sm:$0xff]
    %v38 = vld [vmem:[%s5 + $0x8] sm:$0xff]
    %v39 = vld [vmem:[%s5 + $0x10] sm:$0xff]
    %v40 = vld [vmem:[%s5 + $0x18] sm:$0xff]
    %v41 = vld [vmem:[#allocation2] sm:$0x1]
    %v42 = vld [vmem:[%s0] sm:$0x3]
    %44 = vset.pattern.permute.xlu0 0
    %45 = vperm.xlu0 %44, %v29
    %v46 = vpop.permute.xlu0 %45
    %49 = vset.pattern.permute.xlu0 0
    %50 = vperm.xlu0 %49, %v30
    %v51 = vpop.permute.xlu0 %50
    %54 = vset.pattern.permute.xlu0 0
    %55 = vperm.xlu0 %54, %v31
    %v56 = vpop.permute.xlu0 %55
    %59 = vset.pattern.permute.xlu0 0
    %60 = vperm.xlu0 %59, %v32
    %v61 = vpop.permute.xlu0 %60
    %v63 = vlaneseq
    %v64 = vshrl.u32 %v63, 7
    %v65 = vsub.s32 0, %v64
    %v66 = vrot.slane %v42, %v65
    %v67 = vmul.f32 %v46, %v66
    %v68 = vmul.f32 %v51, %v66
    %v69 = vmul.f32 %v56, %v66
    %v70 = vmul.f32 %v61, %v66
    %72 = vset.pattern.permute.xlu0 0
    %73 = vperm.xlu0 %72, %v33
    %v74 = vpop.permute.xlu0 %73
    %77 = vset.pattern.permute.xlu0 0
    %78 = vperm.xlu0 %77, %v34
    %v79 = vpop.permute.xlu0 %78
    %82 = vset.pattern.permute.xlu0 0
    %83 = vperm.xlu0 %82, %v35
    %v84 = vpop.permute.xlu0 %83
    %87 = vset.pattern.permute.xlu0 0
    %88 = vperm.xlu0 %87, %v36
    %v89 = vpop.permute.xlu0 %88
    %v91 = vadd.f32 %v74, %v67
    %v92 = vadd.f32 %v79, %v68
    %v93 = vadd.f32 %v84, %v69
    %v94 = vadd.f32 %v89, %v70
    %95 = vset.pattern.permute.xlu0 1
    %96 = vperm.xlu0 %95, %v29
    %v97 = vpop.permute.xlu0 %96
    %99 = vset.pattern.permute.xlu0 1
    %100 = vperm.xlu0 %99, %v30
    %v101 = vpop.permute.xlu0 %100
    %103 = vset.pattern.permute.xlu0 1
    %104 = vperm.xlu0 %103, %v31
    %v105 = vpop.permute.xlu0 %104
    %107 = vset.pattern.permute.xlu0 1
    %108 = vperm.xlu0 %107, %v32
    %v109 = vpop.permute.xlu0 %108
    %v111 = vlaneseq
    %v112 = vshrl.u32 %v111, 7
    %v113 = vsub.s32 1, %v112
    %v114 = vrot.slane %v42, %v113
    %v115 = vmul.f32 %v97, %v114
    %v116 = vmul.f32 %v101, %v114
    %v117 = vmul.f32 %v105, %v114
    %v118 = vmul.f32 %v109, %v114
    %v119 = vadd.f32 %v91, %v115
    %v120 = vadd.f32 %v92, %v116
    %v121 = vadd.f32 %v93, %v117
    %v122 = vadd.f32 %v94, %v118
    %v123 = vmul.f32 %v119, 0.5
    %v124 = vmul.f32 %v120, 0.5
    %v125 = vmul.f32 %v121, 0.5
    %v126 = vmul.f32 %v122, 0.5
    %v127 = vmul.f32 %v119, 0.70710677
    %v128 = vmul.f32 %v120, 0.70710677
    %v129 = vmul.f32 %v121, 0.70710677
    %v130 = vmul.f32 %v122, 0.70710677
    %v131 = verf.f32.pop %v127
    %v132 = verf.f32.pop %v128
    %v133 = verf.f32.pop %v129
    %v134 = verf.f32.pop %v130
    %v135 = vadd.f32 %v131, 1.0
    %v136 = vadd.f32 %v132, 1.0
    %v137 = vadd.f32 %v133, 1.0
    %v138 = vadd.f32 %v134, 1.0
    %v139 = vmul.f32 %v123, %v135
    %v140 = vmul.f32 %v124, %v136
    %v141 = vmul.f32 %v125, %v137
    %v142 = vmul.f32 %v126, %v138
    %v143 = vld [vmem:[%s3] sm:$0xff]
    %v144 = vld [vmem:[%s3 + $0x8] sm:$0xff]
    %v145 = vld [vmem:[%s3 + $0x10] sm:$0xff]
    %v146 = vld [vmem:[%s3 + $0x18] sm:$0xff]
    %v147 = vld [vmem:[%s4] sm:$0xff]
    %v148 = vld [vmem:[%s4 + $0x8] sm:$0xff]
    %v149 = vld [vmem:[%s4 + $0x10] sm:$0xff]
    %v150 = vld [vmem:[%s4 + $0x18] sm:$0xff]
    %152 = vset.pattern.permute.xlu0 0
    %153 = vperm.xlu0 %152, %v147
    %v154 = vpop.permute.xlu0 %153
    %157 = vset.pattern.permute.xlu0 0
    %158 = vperm.xlu0 %157, %v148
    %v159 = vpop.permute.xlu0 %158
    %162 = vset.pattern.permute.xlu0 0
    %163 = vperm.xlu0 %162, %v149
    %v164 = vpop.permute.xlu0 %163
    %167 = vset.pattern.permute.xlu0 0
    %168 = vperm.xlu0 %167, %v150
    %v169 = vpop.permute.xlu0 %168
    %vm171 = vcmask 261120
    %v173 = vsel %vm171, %v143, 0
    %v176 = vsel %vm171, %v144, 0
    %v179 = vsel %vm171, %v145, 0
    %v182 = vsel %vm171, %v146, 0
    %184 = vmatprep.subr.mxu0 0.0
    %185 = vmatpush1.msra.mxu0 %v139
    %186 = vmatprep.subr.mxu0 0.0
    %187 = vmatpush1.msra.mxu0 %v140
    %188 = vmatprep.subr.mxu0 0.0
    %189 = vmatpush1.msra.mxu0 %v141
    %190 = vmatprep.subr.mxu0 0.0
    %191 = vmatpush1.msra.mxu0 %v142
    %192 = vmatprep.subr.mxu0 0.0
    %193 = vmatpush1.msra.mxu0 0.0
    %194 = vmatprep.subr.mxu0 0.0
    %195 = vmatpush1.msra.mxu0 0.0
    %196 = vmatprep.subr.mxu0 0.0
    %197 = vmatpush1.msra.mxu0 0.0
    %198 = vmatprep.subr.mxu0 0.0
    %199 = vmatpush1.msra.mxu0 0.0
    %200 = vmatprep.subr.mxu0 0.0
    %201 = vmatpush1.msra.mxu0 0.0
    %202 = vmatprep.subr.mxu0 0.0
    %203 = vmatpush1.msra.mxu0 0.0
    %204 = vmatprep.subr.mxu0 0.0
    %205 = vmatpush1.msra.mxu0 0.0
    %206 = vmatprep.subr.mxu0 0.0
    %207 = vmatpush1.msra.mxu0 0.0
    %208 = vmatprep.subr.mxu0 0.0
    %209 = vmatpush1.msra.mxu0 0.0
    %210 = vmatprep.subr.mxu0 0.0
    %211 = vmatpush1.msra.mxu0 0.0
    %212 = vmatprep.subr.mxu0 0.0
    %213 = vmatpush1.msra.mxu0 0.0
    %214 = vmatprep.subr.mxu0 0.0
    %215 = vmatpush1.msra.mxu0 0.0
    %216 = vmatprep.subr.mxu0 0.0
    %217 = vmatpush1.msra.mxu0 0.0
    %218 = vmatprep.subr.mxu0 0.0
    %219 = vmatpush1.msra.mxu0 0.0
    %220 = vmatprep.subr.mxu0 0.0
    %221 = vmatpush1.msra.mxu0 0.0
    %222 = vmatprep.subr.mxu0 0.0
    %223 = vmatpush1.msra.mxu0 0.0
    %224 = vmatprep.subr.mxu0 0.0
    %225 = vmatpush1.msra.mxu0 0.0
    %226 = vmatprep.subr.mxu0 0.0
    %227 = vmatpush1.msra.mxu0 0.0
    %228 = vmatprep.subr.mxu0 0.0
    %229 = vmatpush1.msra.mxu0 0.0
    %230 = vmatprep.subr.mxu0 0.0
    %231 = vmatpush1.msra.mxu0 0.0
    %232 = vmatprep.subr.mxu0 0.0
    %233 = vmatpush1.msra.mxu0 0.0
    %234 = vmatprep.subr.mxu0 0.0
    %235 = vmatpush1.msra.mxu0 0.0
    %236 = vmatprep.subr.mxu0 0.0
    %237 = vmatpush1.msra.mxu0 0.0
    %238 = vmatprep.subr.mxu0 0.0
    %239 = vmatpush1.msra.mxu0 0.0
    %240 = vmatprep.subr.mxu0 0.0
    %241 = vmatpush1.msra.mxu0 0.0
    %242 = vmatprep.subr.mxu0 0.0
    %243 = vmatpush1.msra.mxu0 0.0
    %244 = vmatprep.subr.mxu0 0.0
    %245 = vmatpush1.msra.mxu0 0.0
    %246 = vmatprep.subr.mxu0 0.0
    %247 = vmatpush1.msra.mxu0 0.0
    %248 = vmatprep.mubr.f32.mxu0 0.0
    %249 = vmatmul.mubr.f32.gmra.mrb[0].mxu0 %v173
    %v250 = vpop.f32.mrb[0].mxu0
    %v251 = vadd.f32 %v154, %v250
    %v252 = vpop.f32.mrb[0].mxu0
    %253 = vmatprep.mubr.f32.mxu0 0.0
    %254 = vmatmul.mubr.f32.gmra.mrb[0].mxu0 %v176
    %v255 = vpop.f32.mrb[0].mxu0
    %v256 = vadd.f32 %v159, %v255
    %v257 = vpop.f32.mrb[0].mxu0
    %258 = vmatprep.mubr.f32.mxu0 0.0
    %259 = vmatmul.mubr.f32.gmra.mrb[0].mxu0 %v179
    %v260 = vpop.f32.mrb[0].mxu0
    %v261 = vadd.f32 %v164, %v260
    %v262 = vpop.f32.mrb[0].mxu0
    %263 = vmatprep.mubr.f32.mxu0 0.0
    %264 = vmatmul.mubr.f32.gmra.mrb[0].mxu0 %v182
    %v265 = vpop.f32.mrb[0].mxu0
    %v266 = vadd.f32 %v169, %v265
    %v267 = vpop.f32.mrb[0].mxu0
    %268 = vdwg.mxu0
    %v269 = vmul.f32 %v251, 0.5
    %v270 = vmul.f32 %v256, 0.5
    %v271 = vmul.f32 %v261, 0.5
    %v272 = vmul.f32 %v266, 0.5
    %v273 = vmul.f32 %v251, 0.70710677
    %v274 = vmul.f32 %v256, 0.70710677
    %v275 = vmul.f32 %v261, 0.70710677
    %v276 = vmul.f32 %v266, 0.70710677
    %v277 = verf.f32.pop %v273
    %v278 = verf.f32.pop %v274
    %v279 = verf.f32.pop %v275
    %v280 = verf.f32.pop %v276
    %v281 = vadd.f32 %v277, 1.0
    %v282 = vadd.f32 %v278, 1.0
    %v283 = vadd.f32 %v279, 1.0
    %v284 = vadd.f32 %v280, 1.0
    %v285 = vmul.f32 %v269, %v281
    %v286 = vmul.f32 %v270, %v282
    %v287 = vmul.f32 %v271, %v283
    %v288 = vmul.f32 %v272, %v284
    %v289 = vld [vmem:[%s3 + $0x20] sm:$0xff]
    %v290 = vld [vmem:[%s3 + $0x28] sm:$0xff]
    %v291 = vld [vmem:[%s3 + $0x30] sm:$0xff]
    %v292 = vld [vmem:[%s3 + $0x38] sm:$0xff]
    %v293 = vld [vmem:[%s4 + $0x20] sm:$0xff]
    %v294 = vld [vmem:[%s4 + $0x28] sm:$0xff]
    %v295 = vld [vmem:[%s4 + $0x30] sm:$0xff]
    %v296 = vld [vmem:[%s4 + $0x38] sm:$0xff]
    %298 = vset.pattern.permute.xlu0 0
    %299 = vperm.xlu0 %298, %v293
    %v300 = vpop.permute.xlu0 %299
    %303 = vset.pattern.permute.xlu0 0
    %304 = vperm.xlu0 %303, %v294
    %v305 = vpop.permute.xlu0 %304
    %308 = vset.pattern.permute.xlu0 0
    %309 = vperm.xlu0 %308, %v295
    %v310 = vpop.permute.xlu0 %309
    %313 = vset.pattern.permute.xlu0 0
    %314 = vperm.xlu0 %313, %v296
    %v315 = vpop.permute.xlu0 %314
    %v318 = vsel %vm171, %v289, 0
    %v321 = vsel %vm171, %v290, 0
    %v324 = vsel %vm171, %v291, 0
    %v327 = vsel %vm171, %v292, 0
    %329 = vmatprep.subr.mxu0 0.0
    %330 = vmatpush1.msra.mxu0 %v285
    %331 = vmatprep.subr.mxu0 0.0
    %332 = vmatpush1.msra.mxu0 %v286
    %333 = vmatprep.subr.mxu0 0.0
    %334 = vmatpush1.msra.mxu0 %v287
    %335 = vmatprep.subr.mxu0 0.0
    %336 = vmatpush1.msra.mxu0 %v288
    %337 = vmatprep.subr.mxu0 0.0
    %338 = vmatpush1.msra.mxu0 0.0
    %339 = vmatprep.subr.mxu0 0.0
    %340 = vmatpush1.msra.mxu0 0.0
    %341 = vmatprep.subr.mxu0 0.0
    %342 = vmatpush1.msra.mxu0 0.0
    %343 = vmatprep.subr.mxu0 0.0
    %344 = vmatpush1.msra.mxu0 0.0
    %345 = vmatprep.subr.mxu0 0.0
    %346 = vmatpush1.msra.mxu0 0.0
    %347 = vmatprep.subr.mxu0 0.0
    %348 = vmatpush1.msra.mxu0 0.0
    %349 = vmatprep.subr.mxu0 0.0
    %350 = vmatpush1.msra.mxu0 0.0
    %351 = vmatprep.subr.mxu0 0.0
    %352 = vmatpush1.msra.mxu0 0.0
    %353 = vmatprep.subr.mxu0 0.0
    %354 = vmatpush1.msra.mxu0 0.0
    %355 = vmatprep.subr.mxu0 0.0
    %356 = vmatpush1.msra.mxu0 0.0
    %357 = vmatprep.subr.mxu0 0.0
    %358 = vmatpush1.msra.mxu0 0.0
    %359 = vmatprep.subr.mxu0 0.0
    %360 = vmatpush1.msra.mxu0 0.0
    %361 = vmatprep.subr.mxu0 0.0
    %362 = vmatpush1.msra.mxu0 0.0
    %363 = vmatprep.subr.mxu0 0.0
    %364 = vmatpush1.msra.mxu0 0.0
    %365 = vmatprep.subr.mxu0 0.0
    %366 = vmatpush1.msra.mxu0 0.0
    %367 = vmatprep.subr.mxu0 0.0
    %368 = vmatpush1.msra.mxu0 0.0
    %369 = vmatprep.subr.mxu0 0.0
    %370 = vmatpush1.msra.mxu0 0.0
    %371 = vmatprep.subr.mxu0 0.0
    %372 = vmatpush1.msra.mxu0 0.0
    %373 = vmatprep.subr.mxu0 0.0
    %374 = vmatpush1.msra.mxu0 0.0
    %375 = vmatprep.subr.mxu0 0.0
    %376 = vmatpush1.msra.mxu0 0.0
    %377 = vmatprep.subr.mxu0 0.0
    %378 = vmatpush1.msra.mxu0 0.0
    %379 = vmatprep.subr.mxu0 0.0
    %380 = vmatpush1.msra.mxu0 0.0
    %381 = vmatprep.subr.mxu0 0.0
    %382 = vmatpush1.msra.mxu0 0.0
    %383 = vmatprep.subr.mxu0 0.0
    %384 = vmatpush1.msra.mxu0 0.0
    %385 = vmatprep.subr.mxu0 0.0
    %386 = vmatpush1.msra.mxu0 0.0
    %387 = vmatprep.subr.mxu0 0.0
    %388 = vmatpush1.msra.mxu0 0.0
    %389 = vmatprep.subr.mxu0 0.0
    %390 = vmatpush1.msra.mxu0 0.0
    %391 = vmatprep.subr.mxu0 0.0
    %392 = vmatpush1.msra.mxu0 0.0
    %393 = vmatprep.mubr.f32.mxu0 0.0
    %394 = vmatmul.mubr.f32.gmra.mrb[0].mxu0 %v318
    %v395 = vpop.f32.mrb[0].mxu0
    %v396 = vadd.f32 %v300, %v395
    %v397 = vpop.f32.mrb[0].mxu0
    %398 = vmatprep.mubr.f32.mxu0 0.0
    %399 = vmatmul.mubr.f32.gmra.mrb[0].mxu0 %v321
    %v400 = vpop.f32.mrb[0].mxu0
    %v401 = vadd.f32 %v305, %v400
    %v402 = vpop.f32.mrb[0].mxu0
    %403 = vmatprep.mubr.f32.mxu0 0.0
    %404 = vmatmul.mubr.f32.gmra.mrb[0].mxu0 %v324
    %v405 = vpop.f32.mrb[0].mxu0
    %v406 = vadd.f32 %v310, %v405
    %v407 = vpop.f32.mrb[0].mxu0
    %408 = vmatprep.mubr.f32.mxu0 0.0
    %409 = vmatmul.mubr.f32.gmra.mrb[0].mxu0 %v327
    %v410 = vpop.f32.mrb[0].mxu0
    %v411 = vadd.f32 %v315, %v410
    %v412 = vpop.f32.mrb[0].mxu0
    %413 = vdwg.mxu0
    %v414 = vmul.f32 %v396, 0.5
    %v415 = vmul.f32 %v401, 0.5
    %v416 = vmul.f32 %v406, 0.5
    %v417 = vmul.f32 %v411, 0.5
    %v418 = vmul.f32 %v396, 0.70710677
    %v419 = vmul.f32 %v401, 0.70710677
    %v420 = vmul.f32 %v406, 0.70710677
    %v421 = vmul.f32 %v411, 0.70710677
    %v422 = verf.f32.pop %v418
    %v423 = verf.f32.pop %v419
    %v424 = verf.f32.pop %v420
    %v425 = verf.f32.pop %v421
    %v426 = vadd.f32 %v422, 1.0
    %v427 = vadd.f32 %v423, 1.0
    %v428 = vadd.f32 %v424, 1.0
    %v429 = vadd.f32 %v425, 1.0
    %v430 = vmul.f32 %v414, %v426
    %v431 = vmul.f32 %v415, %v427
    %v432 = vmul.f32 %v416, %v428
    %v433 = vmul.f32 %v417, %v429
    %v434 = vld [vmem:[%s3 + $0x40] sm:$0xff]
    %v435 = vld [vmem:[%s3 + $0x48] sm:$0xff]
    %v436 = vld [vmem:[%s3 + $0x50] sm:$0xff]
    %v437 = vld [vmem:[%s3 + $0x58] sm:$0xff]
    %v438 = vld [vmem:[%s4 + $0x40] sm:$0xff]
    %v439 = vld [vmem:[%s4 + $0x48] sm:$0xff]
    %v440 = vld [vmem:[%s4 + $0x50] sm:$0xff]
    %v441 = vld [vmem:[%s4 + $0x58] sm:$0xff]
    %443 = vset.pattern.permute.xlu0 0
    %444 = vperm.xlu0 %443, %v438
    %v445 = vpop.permute.xlu0 %444
    %448 = vset.pattern.permute.xlu0 0
    %449 = vperm.xlu0 %448, %v439
    %v450 = vpop.permute.xlu0 %449
    %453 = vset.pattern.permute.xlu0 0
    %454 = vperm.xlu0 %453, %v440
    %v455 = vpop.permute.xlu0 %454
    %458 = vset.pattern.permute.xlu0 0
    %459 = vperm.xlu0 %458, %v441
    %v460 = vpop.permute.xlu0 %459
    %v463 = vsel %vm171, %v434, 0
    %v466 = vsel %vm171, %v435, 0
    %v469 = vsel %vm171, %v436, 0
    %v472 = vsel %vm171, %v437, 0
    %474 = vmatprep.subr.mxu0 0.0
    %475 = vmatpush1.msra.mxu0 %v430
    %476 = vmatprep.subr.mxu0 0.0
    %477 = vmatpush1.msra.mxu0 %v431
    %478 = vmatprep.subr.mxu0 0.0
    %479 = vmatpush1.msra.mxu0 %v432
    %480 = vmatprep.subr.mxu0 0.0
    %481 = vmatpush1.msra.mxu0 %v433
    %482 = vmatprep.subr.mxu0 0.0
    %483 = vmatpush1.msra.mxu0 0.0
    %484 = vmatprep.subr.mxu0 0.0
    %485 = vmatpush1.msra.mxu0 0.0
    %486 = vmatprep.subr.mxu0 0.0
    %487 = vmatpush1.msra.mxu0 0.0
    %488 = vmatprep.subr.mxu0 0.0
    %489 = vmatpush1.msra.mxu0 0.0
    %490 = vmatprep.subr.mxu0 0.0
    %491 = vmatpush1.msra.mxu0 0.0
    %492 = vmatprep.subr.mxu0 0.0
    %493 = vmatpush1.msra.mxu0 0.0
    %494 = vmatprep.subr.mxu0 0.0
    %495 = vmatpush1.msra.mxu0 0.0
    %496 = vmatprep.subr.mxu0 0.0
    %497 = vmatpush1.msra.mxu0 0.0
    %498 = vmatprep.subr.mxu0 0.0
    %499 = vmatpush1.msra.mxu0 0.0
    %500 = vmatprep.subr.mxu0 0.0
    %501 = vmatpush1.msra.mxu0 0.0
    %502 = vmatprep.subr.mxu0 0.0
    %503 = vmatpush1.msra.mxu0 0.0
    %504 = vmatprep.subr.mxu0 0.0
    %505 = vmatpush1.msra.mxu0 0.0
    %506 = vmatprep.subr.mxu0 0.0
    %507 = vmatpush1.msra.mxu0 0.0
    %508 = vmatprep.subr.mxu0 0.0
    %509 = vmatpush1.msra.mxu0 0.0
    %510 = vmatprep.subr.mxu0 0.0
    %511 = vmatpush1.msra.mxu0 0.0
    %512 = vmatprep.subr.mxu0 0.0
    %513 = vmatpush1.msra.mxu0 0.0
    %514 = vmatprep.subr.mxu0 0.0
    %515 = vmatpush1.msra.mxu0 0.0
    %516 = vmatprep.subr.mxu0 0.0
    %517 = vmatpush1.msra.mxu0 0.0
    %518 = vmatprep.subr.mxu0 0.0
    %519 = vmatpush1.msra.mxu0 0.0
    %520 = vmatprep.subr.mxu0 0.0
    %521 = vmatpush1.msra.mxu0 0.0
    %522 = vmatprep.subr.mxu0 0.0
    %523 = vmatpush1.msra.mxu0 0.0
    %524 = vmatprep.subr.mxu0 0.0
    %525 = vmatpush1.msra.mxu0 0.0
    %526 = vmatprep.subr.mxu0 0.0
    %527 = vmatpush1.msra.mxu0 0.0
    %528 = vmatprep.subr.mxu0 0.0
    %529 = vmatpush1.msra.mxu0 0.0
    %530 = vmatprep.subr.mxu0 0.0
    %531 = vmatpush1.msra.mxu0 0.0
    %532 = vmatprep.subr.mxu0 0.0
    %533 = vmatpush1.msra.mxu0 0.0
    %534 = vmatprep.subr.mxu0 0.0
    %535 = vmatpush1.msra.mxu0 0.0
    %536 = vmatprep.subr.mxu0 0.0
    %537 = vmatpush1.msra.mxu0 0.0
    %538 = vmatprep.mubr.f32.mxu0 0.0
    %539 = vmatmul.mubr.f32.gmra.mrb[0].mxu0 %v463
    %v540 = vpop.f32.mrb[0].mxu0
    %v541 = vadd.f32 %v445, %v540
    %v542 = vpop.f32.mrb[0].mxu0
    %543 = vmatprep.mubr.f32.mxu0 0.0
    %544 = vmatmul.mubr.f32.gmra.mrb[0].mxu0 %v466
    %v545 = vpop.f32.mrb[0].mxu0
    %v546 = vadd.f32 %v450, %v545
    %v547 = vpop.f32.mrb[0].mxu0
    %548 = vmatprep.mubr.f32.mxu0 0.0
    %549 = vmatmul.mubr.f32.gmra.mrb[0].mxu0 %v469
    %v550 = vpop.f32.mrb[0].mxu0
    %v551 = vadd.f32 %v455, %v550
    %v552 = vpop.f32.mrb[0].mxu0
    %553 = vmatprep.mubr.f32.mxu0 0.0
    %554 = vmatmul.mubr.f32.gmra.mrb[0].mxu0 %v472
    %v555 = vpop.f32.mrb[0].mxu0
    %v556 = vadd.f32 %v460, %v555
    %v557 = vpop.f32.mrb[0].mxu0
    %558 = vdwg.mxu0
    %v559 = vmul.f32 %v541, 0.5
    %v560 = vmul.f32 %v546, 0.5
    %v561 = vmul.f32 %v551, 0.5
    %v562 = vmul.f32 %v556, 0.5
    %v563 = vmul.f32 %v541, 0.70710677
    %v564 = vmul.f32 %v546, 0.70710677
    %v565 = vmul.f32 %v551, 0.70710677
    %v566 = vmul.f32 %v556, 0.70710677
    %v567 = verf.f32.pop %v563
    %v568 = verf.f32.pop %v564
    %v569 = verf.f32.pop %v565
    %v570 = verf.f32.pop %v566
    %v571 = vadd.f32 %v567, 1.0
    %v572 = vadd.f32 %v568, 1.0
    %v573 = vadd.f32 %v569, 1.0
    %v574 = vadd.f32 %v570, 1.0
    %v575 = vmul.f32 %v559, %v571
    %v576 = vmul.f32 %v560, %v572
    %v577 = vmul.f32 %v561, %v573
    %v578 = vmul.f32 %v562, %v574
    %v579 = vld [vmem:[%s3 + $0x60] sm:$0xff]
    %v580 = vld [vmem:[%s3 + $0x68] sm:$0xff]
    %v581 = vld [vmem:[%s3 + $0x70] sm:$0xff]
    %v582 = vld [vmem:[%s3 + $0x78] sm:$0xff]
    %v583 = vld [vmem:[%s4 + $0x60] sm:$0xff]
    %v584 = vld [vmem:[%s4 + $0x68] sm:$0xff]
    %v585 = vld [vmem:[%s4 + $0x70] sm:$0xff]
    %v586 = vld [vmem:[%s4 + $0x78] sm:$0xff]
    %588 = vset.pattern.permute.xlu0 0
    %589 = vperm.xlu0 %588, %v583
    %v590 = vpop.permute.xlu0 %589
    %593 = vset.pattern.permute.xlu0 0
    %594 = vperm.xlu0 %593, %v584
    %v595 = vpop.permute.xlu0 %594
    %598 = vset.pattern.permute.xlu0 0
    %599 = vperm.xlu0 %598, %v585
    %v600 = vpop.permute.xlu0 %599
    %603 = vset.pattern.permute.xlu0 0
    %604 = vperm.xlu0 %603, %v586
    %v605 = vpop.permute.xlu0 %604
    %v608 = vsel %vm171, %v579, 0
    %v611 = vsel %vm171, %v580, 0
    %v614 = vsel %vm171, %v581, 0
    %v617 = vsel %vm171, %v582, 0
    %619 = vmatprep.subr.mxu0 0.0
    %620 = vmatpush1.msra.mxu0 %v575
    %621 = vmatprep.subr.mxu0 0.0
    %622 = vmatpush1.msra.mxu0 %v576
    %623 = vmatprep.subr.mxu0 0.0
    %624 = vmatpush1.msra.mxu0 %v577
    %625 = vmatprep.subr.mxu0 0.0
    %626 = vmatpush1.msra.mxu0 %v578
    %627 = vmatprep.subr.mxu0 0.0
    %628 = vmatpush1.msra.mxu0 0.0
    %629 = vmatprep.subr.mxu0 0.0
    %630 = vmatpush1.msra.mxu0 0.0
    %631 = vmatprep.subr.mxu0 0.0
    %632 = vmatpush1.msra.mxu0 0.0
    %633 = vmatprep.subr.mxu0 0.0
    %634 = vmatpush1.msra.mxu0 0.0
    %635 = vmatprep.subr.mxu0 0.0
    %636 = vmatpush1.msra.mxu0 0.0
    %637 = vmatprep.subr.mxu0 0.0
    %638 = vmatpush1.msra.mxu0 0.0
    %639 = vmatprep.subr.mxu0 0.0
    %640 = vmatpush1.msra.mxu0 0.0
    %641 = vmatprep.subr.mxu0 0.0
    %642 = vmatpush1.msra.mxu0 0.0
    %643 = vmatprep.subr.mxu0 0.0
    %644 = vmatpush1.msra.mxu0 0.0
    %645 = vmatprep.subr.mxu0 0.0
    %646 = vmatpush1.msra.mxu0 0.0
    %647 = vmatprep.subr.mxu0 0.0
    %648 = vmatpush1.msra.mxu0 0.0
    %649 = vmatprep.subr.mxu0 0.0
    %650 = vmatpush1.msra.mxu0 0.0
    %651 = vmatprep.subr.mxu0 0.0
    %652 = vmatpush1.msra.mxu0 0.0
    %653 = vmatprep.subr.mxu0 0.0
    %654 = vmatpush1.msra.mxu0 0.0
    %655 = vmatprep.subr.mxu0 0.0
    %656 = vmatpush1.msra.mxu0 0.0
    %657 = vmatprep.subr.mxu0 0.0
    %658 = vmatpush1.msra.mxu0 0.0
    %659 = vmatprep.subr.mxu0 0.0
    %660 = vmatpush1.msra.mxu0 0.0
    %661 = vmatprep.subr.mxu0 0.0
    %662 = vmatpush1.msra.mxu0 0.0
    %663 = vmatprep.subr.mxu0 0.0
    %664 = vmatpush1.msra.mxu0 0.0
    %665 = vmatprep.subr.mxu0 0.0
    %666 = vmatpush1.msra.mxu0 0.0
    %667 = vmatprep.subr.mxu0 0.0
    %668 = vmatpush1.msra.mxu0 0.0
    %669 = vmatprep.subr.mxu0 0.0
    %670 = vmatpush1.msra.mxu0 0.0
    %671 = vmatprep.subr.mxu0 0.0
    %672 = vmatpush1.msra.mxu0 0.0
    %673 = vmatprep.subr.mxu0 0.0
    %674 = vmatpush1.msra.mxu0 0.0
    %675 = vmatprep.subr.mxu0 0.0
    %676 = vmatpush1.msra.mxu0 0.0
    %677 = vmatprep.subr.mxu0 0.0
    %678 = vmatpush1.msra.mxu0 0.0
    %679 = vmatprep.subr.mxu0 0.0
    %680 = vmatpush1.msra.mxu0 0.0
    %681 = vmatprep.subr.mxu0 0.0
    %682 = vmatpush1.msra.mxu0 0.0
    %683 = vmatprep.mubr.f32.mxu0 0.0
    %684 = vmatmul.mubr.f32.gmra.mrb[0].mxu0 %v608
    %v685 = vpop.f32.mrb[0].mxu0
    %v686 = vadd.f32 %v590, %v685
    %v687 = vpop.f32.mrb[0].mxu0
    %688 = vmatprep.mubr.f32.mxu0 0.0
    %689 = vmatmul.mubr.f32.gmra.mrb[0].mxu0 %v611
    %v690 = vpop.f32.mrb[0].mxu0
    %v691 = vadd.f32 %v595, %v690
    %v692 = vpop.f32.mrb[0].mxu0
    %693 = vmatprep.mubr.f32.mxu0 0.0
    %694 = vmatmul.mubr.f32.gmra.mrb[0].mxu0 %v614
    %v695 = vpop.f32.mrb[0].mxu0
    %v696 = vadd.f32 %v600, %v695
    %v697 = vpop.f32.mrb[0].mxu0
    %698 = vmatprep.mubr.f32.mxu0 0.0
    %699 = vmatmul.mubr.f32.gmra.mrb[0].mxu0 %v617
    %v700 = vpop.f32.mrb[0].mxu0
    %v701 = vadd.f32 %v605, %v700
    %v702 = vpop.f32.mrb[0].mxu0
    %703 = vdwg.mxu0
    %v704 = vmul.f32 %v686, 0.5
    %v705 = vmul.f32 %v691, 0.5
    %v706 = vmul.f32 %v696, 0.5
    %v707 = vmul.f32 %v701, 0.5
    %v708 = vmul.f32 %v686, 0.70710677
    %v709 = vmul.f32 %v691, 0.70710677
    %v710 = vmul.f32 %v696, 0.70710677
    %v711 = vmul.f32 %v701, 0.70710677
    %v712 = verf.f32.pop %v708
    %v713 = verf.f32.pop %v709
    %v714 = verf.f32.pop %v710
    %v715 = verf.f32.pop %v711
    %v716 = vadd.f32 %v712, 1.0
    %v717 = vadd.f32 %v713, 1.0
    %v718 = vadd.f32 %v714, 1.0
    %v719 = vadd.f32 %v715, 1.0
    %v720 = vmul.f32 %v704, %v716
    %v721 = vmul.f32 %v705, %v717
    %v722 = vmul.f32 %v706, %v718
    %v723 = vmul.f32 %v707, %v719
    %v724 = vld [vmem:[%s3 + $0x80] sm:$0xff]
    %v725 = vld [vmem:[%s3 + $0x88] sm:$0xff]
    %v726 = vld [vmem:[%s3 + $0x90] sm:$0xff]
    %v727 = vld [vmem:[%s3 + $0x98] sm:$0xff]
    %v728 = vld [vmem:[%s4 + $0x80] sm:$0xff]
    %v729 = vld [vmem:[%s4 + $0x88] sm:$0xff]
    %v730 = vld [vmem:[%s4 + $0x90] sm:$0xff]
    %v731 = vld [vmem:[%s4 + $0x98] sm:$0xff]
    %733 = vset.pattern.permute.xlu0 0
    %734 = vperm.xlu0 %733, %v728
    %v735 = vpop.permute.xlu0 %734
    %738 = vset.pattern.permute.xlu0 0
    %739 = vperm.xlu0 %738, %v729
    %v740 = vpop.permute.xlu0 %739
    %743 = vset.pattern.permute.xlu0 0
    %744 = vperm.xlu0 %743, %v730
    %v745 = vpop.permute.xlu0 %744
    %748 = vset.pattern.permute.xlu0 0
    %749 = vperm.xlu0 %748, %v731
    %v750 = vpop.permute.xlu0 %749
    %v753 = vsel %vm171, %v724, 0
    %v756 = vsel %vm171, %v725, 0
    %v759 = vsel %vm171, %v726, 0
    %v762 = vsel %vm171, %v727, 0
    %764 = vmatprep.subr.mxu0 0.0
    %765 = vmatpush1.msra.mxu0 %v720
    %766 = vmatprep.subr.mxu0 0.0
    %767 = vmatpush1.msra.mxu0 %v721
    %768 = vmatprep.subr.mxu0 0.0
    %769 = vmatpush1.msra.mxu0 %v722
    %770 = vmatprep.subr.mxu0 0.0
    %771 = vmatpush1.msra.mxu0 %v723
    %772 = vmatprep.subr.mxu0 0.0
    %773 = vmatpush1.msra.mxu0 0.0
    %774 = vmatprep.subr.mxu0 0.0
    %775 = vmatpush1.msra.mxu0 0.0
    %776 = vmatprep.subr.mxu0 0.0
    %777 = vmatpush1.msra.mxu0 0.0
    %778 = vmatprep.subr.mxu0 0.0
    %779 = vmatpush1.msra.mxu0 0.0
    %780 = vmatprep.subr.mxu0 0.0
    %781 = vmatpush1.msra.mxu0 0.0
    %782 = vmatprep.subr.mxu0 0.0
    %783 = vmatpush1.msra.mxu0 0.0
    %784 = vmatprep.subr.mxu0 0.0
    %785 = vmatpush1.msra.mxu0 0.0
    %786 = vmatprep.subr.mxu0 0.0
    %787 = vmatpush1.msra.mxu0 0.0
    %788 = vmatprep.subr.mxu0 0.0
    %789 = vmatpush1.msra.mxu0 0.0
    %790 = vmatprep.subr.mxu0 0.0
    %791 = vmatpush1.msra.mxu0 0.0
    %792 = vmatprep.subr.mxu0 0.0
    %793 = vmatpush1.msra.mxu0 0.0
    %794 = vmatprep.subr.mxu0 0.0
    %795 = vmatpush1.msra.mxu0 0.0
    %796 = vmatprep.subr.mxu0 0.0
    %797 = vmatpush1.msra.mxu0 0.0
    %798 = vmatprep.subr.mxu0 0.0
    %799 = vmatpush1.msra.mxu0 0.0
    %800 = vmatprep.subr.mxu0 0.0
    %801 = vmatpush1.msra.mxu0 0.0
    %802 = vmatprep.subr.mxu0 0.0
    %803 = vmatpush1.msra.mxu0 0.0
    %804 = vmatprep.subr.mxu0 0.0
    %805 = vmatpush1.msra.mxu0 0.0
    %806 = vmatprep.subr.mxu0 0.0
    %807 = vmatpush1.msra.mxu0 0.0
    %808 = vmatprep.subr.mxu0 0.0
    %809 = vmatpush1.msra.mxu0 0.0
    %810 = vmatprep.subr.mxu0 0.0
    %811 = vmatpush1.msra.mxu0 0.0
    %812 = vmatprep.subr.mxu0 0.0
    %813 = vmatpush1.msra.mxu0 0.0
    %814 = vmatprep.subr.mxu0 0.0
    %815 = vmatpush1.msra.mxu0 0.0
    %816 = vmatprep.subr.mxu0 0.0
    %817 = vmatpush1.msra.mxu0 0.0
    %818 = vmatprep.subr.mxu0 0.0
    %819 = vmatpush1.msra.mxu0 0.0
    %820 = vmatprep.subr.mxu0 0.0
    %821 = vmatpush1.msra.mxu0 0.0
    %822 = vmatprep.subr.mxu0 0.0
    %823 = vmatpush1.msra.mxu0 0.0
    %824 = vmatprep.subr.mxu0 0.0
    %825 = vmatpush1.msra.mxu0 0.0
    %826 = vmatprep.subr.mxu0 0.0
    %827 = vmatpush1.msra.mxu0 0.0
    %828 = vmatprep.mubr.f32.mxu0 0.0
    %829 = vmatmul.mubr.f32.gmra.mrb[0].mxu0 %v753
    %v830 = vpop.f32.mrb[0].mxu0
    %v831 = vadd.f32 %v735, %v830
    %v832 = vpop.f32.mrb[0].mxu0
    %833 = vmatprep.mubr.f32.mxu0 0.0
    %834 = vmatmul.mubr.f32.gmra.mrb[0].mxu0 %v756
    %v835 = vpop.f32.mrb[0].mxu0
    %v836 = vadd.f32 %v740, %v835
    %v837 = vpop.f32.mrb[0].mxu0
    %838 = vmatprep.mubr.f32.mxu0 0.0
    %839 = vmatmul.mubr.f32.gmra.mrb[0].mxu0 %v759
    %v840 = vpop.f32.mrb[0].mxu0
    %v841 = vadd.f32 %v745, %v840
    %v842 = vpop.f32.mrb[0].mxu0
    %843 = vmatprep.mubr.f32.mxu0 0.0
    %844 = vmatmul.mubr.f32.gmra.mrb[0].mxu0 %v762
    %v845 = vpop.f32.mrb[0].mxu0
    %v846 = vadd.f32 %v750, %v845
    %v847 = vpop.f32.mrb[0].mxu0
    %848 = vdwg.mxu0
    %v849 = vmul.f32 %v831, 0.5
    %v850 = vmul.f32 %v836, 0.5
    %v851 = vmul.f32 %v841, 0.5
    %v852 = vmul.f32 %v846, 0.5
    %v853 = vmul.f32 %v831, 0.70710677
    %v854 = vmul.f32 %v836, 0.70710677
    %v855 = vmul.f32 %v841, 0.70710677
    %v856 = vmul.f32 %v846, 0.70710677
    %v857 = verf.f32.pop %v853
    %v858 = verf.f32.pop %v854
    %v859 = verf.f32.pop %v855
    %v860 = verf.f32.pop %v856
    %v861 = vadd.f32 %v857, 1.0
    %v862 = vadd.f32 %v858, 1.0
    %v863 = vadd.f32 %v859, 1.0
    %v864 = vadd.f32 %v860, 1.0
    %v865 = vmul.f32 %v849, %v861
    %v866 = vmul.f32 %v850, %v862
    %v867 = vmul.f32 %v851, %v863
    %v868 = vmul.f32 %v852, %v864
    %v869 = vld [vmem:[%s3 + $0xa0] sm:$0xff]
    %v870 = vld [vmem:[%s3 + $0xa8] sm:$0xff]
    %v871 = vld [vmem:[%s3 + $0xb0] sm:$0xff]
    %v872 = vld [vmem:[%s3 + $0xb8] sm:$0xff]
    %v873 = vld [vmem:[%s4 + $0xa0] sm:$0xff]
    %v874 = vld [vmem:[%s4 + $0xa8] sm:$0xff]
    %v875 = vld [vmem:[%s4 + $0xb0] sm:$0xff]
    %v876 = vld [vmem:[%s4 + $0xb8] sm:$0xff]
    %878 = vset.pattern.permute.xlu0 0
    %879 = vperm.xlu0 %878, %v873
    %v880 = vpop.permute.xlu0 %879
    %883 = vset.pattern.permute.xlu0 0
    %884 = vperm.xlu0 %883, %v874
    %v885 = vpop.permute.xlu0 %884
    %888 = vset.pattern.permute.xlu0 0
    %889 = vperm.xlu0 %888, %v875
    %v890 = vpop.permute.xlu0 %889
    %893 = vset.pattern.permute.xlu0 0
    %894 = vperm.xlu0 %893, %v876
    %v895 = vpop.permute.xlu0 %894
    %v898 = vsel %vm171, %v869, 0
    %v901 = vsel %vm171, %v870, 0
    %v904 = vsel %vm171, %v871, 0
    %v907 = vsel %vm171, %v872, 0
    %909 = vmatprep.subr.mxu0 0.0
    %910 = vmatpush1.msra.mxu0 %v865
    %911 = vmatprep.subr.mxu0 0.0
    %912 = vmatpush1.msra.mxu0 %v866
    %913 = vmatprep.subr.mxu0 0.0
    %914 = vmatpush1.msra.mxu0 %v867
    %915 = vmatprep.subr.mxu0 0.0
    %916 = vmatpush1.msra.mxu0 %v868
    %917 = vmatprep.subr.mxu0 0.0
    %918 = vmatpush1.msra.mxu0 0.0
    %919 = vmatprep.subr.mxu0 0.0
    %920 = vmatpush1.msra.mxu0 0.0
    %921 = vmatprep.subr.mxu0 0.0
    %922 = vmatpush1.msra.mxu0 0.0
    %923 = vmatprep.subr.mxu0 0.0
    %924 = vmatpush1.msra.mxu0 0.0
    %925 = vmatprep.subr.mxu0 0.0
    %926 = vmatpush1.msra.mxu0 0.0
    %927 = vmatprep.subr.mxu0 0.0
    %928 = vmatpush1.msra.mxu0 0.0
    %929 = vmatprep.subr.mxu0 0.0
    %930 = vmatpush1.msra.mxu0 0.0
    %931 = vmatprep.subr.mxu0 0.0
    %932 = vmatpush1.msra.mxu0 0.0
    %933 = vmatprep.subr.mxu0 0.0
    %934 = vmatpush1.msra.mxu0 0.0
    %935 = vmatprep.subr.mxu0 0.0
    %936 = vmatpush1.msra.mxu0 0.0
    %937 = vmatprep.subr.mxu0 0.0
    %938 = vmatpush1.msra.mxu0 0.0
    %939 = vmatprep.subr.mxu0 0.0
    %940 = vmatpush1.msra.mxu0 0.0
    %941 = vmatprep.subr.mxu0 0.0
    %942 = vmatpush1.msra.mxu0 0.0
    %943 = vmatprep.subr.mxu0 0.0
    %944 = vmatpush1.msra.mxu0 0.0
    %945 = vmatprep.subr.mxu0 0.0
    %946 = vmatpush1.msra.mxu0 0.0
    %947 = vmatprep.subr.mxu0 0.0
    %948 = vmatpush1.msra.mxu0 0.0
    %949 = vmatprep.subr.mxu0 0.0
    %950 = vmatpush1.msra.mxu0 0.0
    %951 = vmatprep.subr.mxu0 0.0
    %952 = vmatpush1.msra.mxu0 0.0
    %953 = vmatprep.subr.mxu0 0.0
    %954 = vmatpush1.msra.mxu0 0.0
    %955 = vmatprep.subr.mxu0 0.0
    %956 = vmatpush1.msra.mxu0 0.0
    %957 = vmatprep.subr.mxu0 0.0
    %958 = vmatpush1.msra.mxu0 0.0
    %959 = vmatprep.subr.mxu0 0.0
    %960 = vmatpush1.msra.mxu0 0.0
    %961 = vmatprep.subr.mxu0 0.0
    %962 = vmatpush1.msra.mxu0 0.0
    %963 = vmatprep.subr.mxu0 0.0
    %964 = vmatpush1.msra.mxu0 0.0
    %965 = vmatprep.subr.mxu0 0.0
    %966 = vmatpush1.msra.mxu0 0.0
    %967 = vmatprep.subr.mxu0 0.0
    %968 = vmatpush1.msra.mxu0 0.0
    %969 = vmatprep.subr.mxu0 0.0
    %970 = vmatpush1.msra.mxu0 0.0
    %971 = vmatprep.subr.mxu0 0.0
    %972 = vmatpush1.msra.mxu0 0.0
    %973 = vmatprep.mubr.f32.mxu0 0.0
    %974 = vmatmul.mubr.f32.gmra.mrb[0].mxu0 %v898
    %v975 = vpop.f32.mrb[0].mxu0
    %v976 = vadd.f32 %v880, %v975
    %v977 = vpop.f32.mrb[0].mxu0
    %978 = vmatprep.mubr.f32.mxu0 0.0
    %979 = vmatmul.mubr.f32.gmra.mrb[0].mxu0 %v901
    %v980 = vpop.f32.mrb[0].mxu0
    %v981 = vadd.f32 %v885, %v980
    %v982 = vpop.f32.mrb[0].mxu0
    %983 = vmatprep.mubr.f32.mxu0 0.0
    %984 = vmatmul.mubr.f32.gmra.mrb[0].mxu0 %v904
    %v985 = vpop.f32.mrb[0].mxu0
    %v986 = vadd.f32 %v890, %v985
    %v987 = vpop.f32.mrb[0].mxu0
    %988 = vmatprep.mubr.f32.mxu0 0.0
    %989 = vmatmul.mubr.f32.gmra.mrb[0].mxu0 %v907
    %v990 = vpop.f32.mrb[0].mxu0
    %v991 = vadd.f32 %v895, %v990
    %v992 = vpop.f32.mrb[0].mxu0
    %993 = vdwg.mxu0
    %v994 = vmul.f32 %v976, 0.5
    %v995 = vmul.f32 %v981, 0.5
    %v996 = vmul.f32 %v986, 0.5
    %v997 = vmul.f32 %v991, 0.5
    %v998 = vmul.f32 %v976, 0.70710677
    %v999 = vmul.f32 %v981, 0.70710677
    %v1000 = vmul.f32 %v986, 0.70710677
    %v1001 = vmul.f32 %v991, 0.70710677
    %v1002 = verf.f32.pop %v998
    %v1003 = verf.f32.pop %v999
    %v1004 = verf.f32.pop %v1000
    %v1005 = verf.f32.pop %v1001
    %v1006 = vadd.f32 %v1002, 1.0
    %v1007 = vadd.f32 %v1003, 1.0
    %v1008 = vadd.f32 %v1004, 1.0
    %v1009 = vadd.f32 %v1005, 1.0
    %v1010 = vmul.f32 %v994, %v1006
    %v1011 = vmul.f32 %v995, %v1007
    %v1012 = vmul.f32 %v996, %v1008
    %v1013 = vmul.f32 %v997, %v1009
    %v1014 = vld [vmem:[%s3 + $0xc0] sm:$0xff]
    %v1015 = vld [vmem:[%s3 + $0xc8] sm:$0xff]
    %v1016 = vld [vmem:[%s3 + $0xd0] sm:$0xff]
    %v1017 = vld [vmem:[%s3 + $0xd8] sm:$0xff]
    %v1018 = vld [vmem:[%s4 + $0xc0] sm:$0xff]
    %v1019 = vld [vmem:[%s4 + $0xc8] sm:$0xff]
    %v1020 = vld [vmem:[%s4 + $0xd0] sm:$0xff]
    %v1021 = vld [vmem:[%s4 + $0xd8] sm:$0xff]
    %1023 = vset.pattern.permute.xlu0 0
    %1024 = vperm.xlu0 %1023, %v1018
    %v1025 = vpop.permute.xlu0 %1024
    %1028 = vset.pattern.permute.xlu0 0
    %1029 = vperm.xlu0 %1028, %v1019
    %v1030 = vpop.permute.xlu0 %1029
    %1033 = vset.pattern.permute.xlu0 0
    %1034 = vperm.xlu0 %1033, %v1020
    %v1035 = vpop.permute.xlu0 %1034
    %1038 = vset.pattern.permute.xlu0 0
    %1039 = vperm.xlu0 %1038, %v1021
    %v1040 = vpop.permute.xlu0 %1039
    %v1043 = vsel %vm171, %v1014, 0
    %v1046 = vsel %vm171, %v1015, 0
    %v1049 = vsel %vm171, %v1016, 0
    %v1052 = vsel %vm171, %v1017, 0
    %1054 = vmatprep.subr.mxu0 0.0
    %1055 = vmatpush1.msra.mxu0 %v1010
    %1056 = vmatprep.subr.mxu0 0.0
    %1057 = vmatpush1.msra.mxu0 %v1011
    %1058 = vmatprep.subr.mxu0 0.0
    %1059 = vmatpush1.msra.mxu0 %v1012
    %1060 = vmatprep.subr.mxu0 0.0
    %1061 = vmatpush1.msra.mxu0 %v1013
    %1062 = vmatprep.subr.mxu0 0.0
    %1063 = vmatpush1.msra.mxu0 0.0
    %1064 = vmatprep.subr.mxu0 0.0
    %1065 = vmatpush1.msra.mxu0 0.0
    %1066 = vmatprep.subr.mxu0 0.0
    %1067 = vmatpush1.msra.mxu0 0.0
    %1068 = vmatprep.subr.mxu0 0.0
    %1069 = vmatpush1.msra.mxu0 0.0
    %1070 = vmatprep.subr.mxu0 0.0
    %1071 = vmatpush1.msra.mxu0 0.0
    %1072 = vmatprep.subr.mxu0 0.0
    %1073 = vmatpush1.msra.mxu0 0.0
    %1074 = vmatprep.subr.mxu0 0.0
    %1075 = vmatpush1.msra.mxu0 0.0
    %1076 = vmatprep.subr.mxu0 0.0
    %1077 = vmatpush1.msra.mxu0 0.0
    %1078 = vmatprep.subr.mxu0 0.0
    %1079 = vmatpush1.msra.mxu0 0.0
    %1080 = vmatprep.subr.mxu0 0.0
    %1081 = vmatpush1.msra.mxu0 0.0
    %1082 = vmatprep.subr.mxu0 0.0
    %1083 = vmatpush1.msra.mxu0 0.0
    %1084 = vmatprep.subr.mxu0 0.0
    %1085 = vmatpush1.msra.mxu0 0.0
    %1086 = vmatprep.subr.mxu0 0.0
    %1087 = vmatpush1.msra.mxu0 0.0
    %1088 = vmatprep.subr.mxu0 0.0
    %1089 = vmatpush1.msra.mxu0 0.0
    %1090 = vmatprep.subr.mxu0 0.0
    %1091 = vmatpush1.msra.mxu0 0.0
    %1092 = vmatprep.subr.mxu0 0.0
    %1093 = vmatpush1.msra.mxu0 0.0
    %1094 = vmatprep.subr.mxu0 0.0
    %1095 = vmatpush1.msra.mxu0 0.0
    %1096 = vmatprep.subr.mxu0 0.0
    %1097 = vmatpush1.msra.mxu0 0.0
    %1098 = vmatprep.subr.mxu0 0.0
    %1099 = vmatpush1.msra.mxu0 0.0
    %1100 = vmatprep.subr.mxu0 0.0
    %1101 = vmatpush1.msra.mxu0 0.0
    %1102 = vmatprep.subr.mxu0 0.0
    %1103 = vmatpush1.msra.mxu0 0.0
    %1104 = vmatprep.subr.mxu0 0.0
    %1105 = vmatpush1.msra.mxu0 0.0
    %1106 = vmatprep.subr.mxu0 0.0
    %1107 = vmatpush1.msra.mxu0 0.0
    %1108 = vmatprep.subr.mxu0 0.0
    %1109 = vmatpush1.msra.mxu0 0.0
    %1110 = vmatprep.subr.mxu0 0.0
    %1111 = vmatpush1.msra.mxu0 0.0
    %1112 = vmatprep.subr.mxu0 0.0
    %1113 = vmatpush1.msra.mxu0 0.0
    %1114 = vmatprep.subr.mxu0 0.0
    %1115 = vmatpush1.msra.mxu0 0.0
    %1116 = vmatprep.subr.mxu0 0.0
    %1117 = vmatpush1.msra.mxu0 0.0
    %1118 = vmatprep.mubr.f32.mxu0 0.0
    %1119 = vmatmul.mubr.f32.gmra.mrb[0].mxu0 %v1043
    %v1120 = vpop.f32.mrb[0].mxu0
    %v1121 = vadd.f32 %v1025, %v1120
    %v1122 = vpop.f32.mrb[0].mxu0
    %1123 = vmatprep.mubr.f32.mxu0 0.0
    %1124 = vmatmul.mubr.f32.gmra.mrb[0].mxu0 %v1046
    %v1125 = vpop.f32.mrb[0].mxu0
    %v1126 = vadd.f32 %v1030, %v1125
    %v1127 = vpop.f32.mrb[0].mxu0
    %1128 = vmatprep.mubr.f32.mxu0 0.0
    %1129 = vmatmul.mubr.f32.gmra.mrb[0].mxu0 %v1049
    %v1130 = vpop.f32.mrb[0].mxu0
    %v1131 = vadd.f32 %v1035, %v1130
    %v1132 = vpop.f32.mrb[0].mxu0
    %1133 = vmatprep.mubr.f32.mxu0 0.0
    %1134 = vmatmul.mubr.f32.gmra.mrb[0].mxu0 %v1052
    %v1135 = vpop.f32.mrb[0].mxu0
    %v1136 = vadd.f32 %v1040, %v1135
    %v1137 = vpop.f32.mrb[0].mxu0
    %1138 = vdwg.mxu0
    %v1139 = vmul.f32 %v1121, 0.5
    %v1140 = vmul.f32 %v1126, 0.5
    %v1141 = vmul.f32 %v1131, 0.5
    %v1142 = vmul.f32 %v1136, 0.5
    %v1143 = vmul.f32 %v1121, 0.70710677
    %v1144 = vmul.f32 %v1126, 0.70710677
    %v1145 = vmul.f32 %v1131, 0.70710677
    %v1146 = vmul.f32 %v1136, 0.70710677
    %v1147 = verf.f32.pop %v1143
    %v1148 = verf.f32.pop %v1144
    %v1149 = verf.f32.pop %v1145
    %v1150 = verf.f32.pop %v1146
    %v1151 = vadd.f32 %v1147, 1.0
    %v1152 = vadd.f32 %v1148, 1.0
    %v1153 = vadd.f32 %v1149, 1.0
    %v1154 = vadd.f32 %v1150, 1.0
    %v1155 = vmul.f32 %v1139, %v1151
    %v1156 = vmul.f32 %v1140, %v1152
    %v1157 = vmul.f32 %v1141, %v1153
    %v1158 = vmul.f32 %v1142, %v1154
    %1160 = vset.pattern.permute.xlu0 0
    %1161 = vperm.xlu0 %1160, %v37
    %v1162 = vpop.permute.xlu0 %1161
    %1165 = vset.pattern.permute.xlu0 0
    %1166 = vperm.xlu0 %1165, %v38
    %v1167 = vpop.permute.xlu0 %1166
    %1170 = vset.pattern.permute.xlu0 0
    %1171 = vperm.xlu0 %1170, %v39
    %v1172 = vpop.permute.xlu0 %1171
    %1175 = vset.pattern.permute.xlu0 0
    %1176 = vperm.xlu0 %1175, %v40
    %v1177 = vpop.permute.xlu0 %1176
    %v1179 = vmul.f32 %v1162, %v1155
    %v1180 = vmul.f32 %v1167, %v1156
    %v1181 = vmul.f32 %v1172, %v1157
    %v1182 = vmul.f32 %v1177, %v1158
    %v1183 = vadd.f32 %v1179, %v1180
    %v1184 = vadd.f32 %v1183, %v1181
    %v1185 = vadd.f32 %v1184, %v1182
    %v1186 = vrot.slane %v1185, 4
    %v1187 = vadd.f32 %v1185, %v1186
    %v1188 = vrot.slane %v1187, 2
    %v1189 = vadd.f32 %v1187, %v1188
    %v1190 = vrot.slane %v1189, 1
    %v1191 = vadd.f32 %v1189, %v1190
    %1193 = vset.pattern.permute.xlu0 0
    %1194 = vperm.xlu0 %1193, %v41
    %v1195 = vpop.permute.xlu0 %1194
    %v1197 = vlaneseq
    %v1198 = vshrl.u32 %v1197, 7
    %v1199 = vsub.s32 0, %v1198
    %v1200 = vrot.slane %v1195, %v1199
    %v1201 = vadd.f32 %v1191, %v1200
    %v1202 = vtanh.pop %v1201
    %v1203 = vadd.f32 %v1202, 1.0
    %v1204 = vmul.f32 %v1203, 0.5
    %1205 = vst [vmem:[#allocation3] sm:$0x1] %v1204
    // Predicated region
    $region30: #{tpu_custom_call.1} parent=1 // pred_check
      _
    $region31: #{tpu_custom_call.1} parent=1 // pred_check_branch
      %1207 = sbr.rel (0) target = $region33
    $region32: #{tpu_custom_call.1} parent=1 // pred_region
      %s1209 = ssub.s32 16, 16
      %1210 = vsyncadd [#allocation4], %s1209
      %s1212 = sshll.u32 [#allocation3], 4
      %s1213 = int_to_ptr.vmem [resolvable:$true] %s1212
      %1215 = dma.vmem_to_hbm [thread:$0]  %s1213, 16, %s7, [#allocation4]
    $region33: #{tpu_custom_call.1} parent=1 // pred_fallthru
      _
    // Predicated region
    $region34: #{tpu_custom_call.1} parent=1 // pred_check
      _
    $region35: #{tpu_custom_call.1} parent=1 // pred_check_branch
      %1217 = sbr.rel (0) target = $region37
    $region36: #{tpu_custom_call.1} parent=1 // pred_region
      %1218 = dma.done [#allocation4], 16
    $region37: #{tpu_custom_call.1} parent=1 // pred_fallthru
      _
    %1219 = vsyncpa [#allocation4], 1

</llo_original>
